<compile_context>
chip_gen: v6e
topology: v6e:2x2x1
jax: 0.10.0
libtpu: 0.0.40
codegen_flags: <defaults>
</compile_context>

<pallas_src>
import jax
import jax.numpy as jnp
from jax import lax
from jax.experimental import pallas as pl
from jax.experimental.pallas import tpu as pltpu


# ------------------------------ small helpers ------------------------------

def _round_up(n, m):
    return ((n + m - 1) // m) * m


# 32 MiB scoped VMEM: half of v7x's 64 MiB physical VMEM, comfortably inside
# v5e/v6e's 128 MiB, and far above what the tiles below actually need.
_VMEM_LIMIT = 32 * 1024 * 1024
_NORM_EPS_SQ = 1e-24   # (F.normalize eps = 1e-12) ** 2


def _pick_row_tile(R):
    """Row tile: MXU-sized when possible, and guaranteeing >=2 tiles along the
    'parallel' grid axis so both v7x TensorCores get work on small problems."""
    for t in (512, 256, 128):
        if R >= 2 * t:
            return t
    half = _round_up(max(R // 2, 1), 8)
    return min(half, _round_up(R, 8))


def _pick_div_tile(n, candidates, prefer_two=True):
    divs = [c for c in candidates if c <= n and n % c == 0]
    if prefer_two:
        for c in divs:
            if n // c >= 2:
                return c
    return divs[0] if divs else n


# --------------- encoder kernels: matmul + fused L2-normalize ---------------

def _encode_norm_resident_kernel(x_ref, w_ref, o_ref):
    # x_ref: (TM, Fp) bf16, w_ref: (Fp, Mp) bf16 (resident, DMA'd once),
    # o_ref: (TM, Mp) bf16.  Single-shot matmul, f32 accumulate, fused L2-norm.
    acc = jnp.dot(x_ref[...], w_ref[...], preferred_element_type=jnp.float32)
    inv_norm = lax.rsqrt(
        jnp.maximum(jnp.sum(acc * acc, axis=1, keepdims=True), _NORM_EPS_SQ))
    o_ref[...] = (acc * inv_norm).astype(o_ref.dtype)


def _encode_norm_ktiled_kernel(x_ref, w_ref, o_ref, acc_ref):
    # Fallback for large feature dims: K-tiled reduction with an f32
    # accumulator resident across the K grid axis; L2-norm in the K epilogue.
    k = pl.program_id(1)

    @pl.when(k == 0)
    def _():
        acc_ref[...] = jnp.zeros_like(acc_ref)

    acc_ref[...] += jnp.dot(x_ref[...], w_ref[...],
                            preferred_element_type=jnp.float32)

    @pl.when(k == pl.num_programs(1) - 1)
    def _():
        acc = acc_ref[...]
        inv_norm = lax.rsqrt(
            jnp.maximum(jnp.sum(acc * acc, axis=1, keepdims=True),
                        _NORM_EPS_SQ))
        o_ref[...] = (acc * inv_norm).astype(o_ref.dtype)


def encode_normalize_pair(xq, xk, w):
    """Encode + L2-normalize queries (rows [0,B)) and keys (rows [B,2B)) with a
    single bias-free Linear; returns the padded (Rp, Mp) bf16 embedding slab."""
    B, F = xq.shape
    F2, M = w.shape
    assert F == F2
    R = 2 * B
    Mp = _round_up(M, 128)                 # lane-dense output columns
    tm = _pick_row_tile(R)                 # row tile (>=2 tiles when possible)
    Rp = _round_up(R, tm)

    # Resident-W path whenever the full padded weight plus the double-buffered
    # x/out tiles fit well inside the VMEM budget: collapses the K grid axis,
    # removes the accumulator scratch, and W is DMA'd from HBM once total
    # instead of once per row tile.
    Fp_full = _round_up(F, 128)
    resident_bytes = (2 * Fp_full * Mp * 2      # W (worst-case 2 buffers)
                      + 2 * tm * Fp_full * 2    # x tile (double-buffered)
                      + 2 * tm * Mp * 2         # out tile
                      + tm * Mp * 4)            # f32 intermediate headroom
    use_resident = resident_bytes <= _VMEM_LIMIT // 2

    if use_resident:
        Fp = Fp_full
    else:
        tk = min(512, _round_up(F, 128))
        Fp = _round_up(F, tk)

    # Padded bf16 inputs built with direct .at[] writes (no concat+pad chain).
    # Zero padding keeps both the matmul and the row norms exact.
    # NOTE: in a training loop, `wb` is static and should be built once and
    # reused across steps.
    xb = jnp.zeros((Rp, Fp), jnp.bfloat16)
    xb = xb.at[:B, :F].set(xq.astype(jnp.bfloat16))
    xb = xb.at[B:R, :F].set(xk.astype(jnp.bfloat16))
    wb = jnp.zeros((Fp, Mp), jnp.bfloat16).at[:F, :M].set(w.astype(jnp.bfloat16))

    if use_resident:
        emb = pl.pallas_call(
            _encode_norm_resident_kernel,
            out_shape=jax.ShapeDtypeStruct((Rp, Mp), jnp.bfloat16),
            grid=(Rp // tm,),
            in_specs=[
                pl.BlockSpec((tm, Fp), lambda i: (i, 0)),
                pl.BlockSpec((Fp, Mp), lambda i: (0, 0)),   # W resident
            ],
            out_specs=pl.BlockSpec((tm, Mp), lambda i: (i, 0)),
            compiler_params=pltpu.CompilerParams(
                dimension_semantics=("parallel",),
                vmem_limit_bytes=_VMEM_LIMIT),
        )(xb, wb)
    else:
        emb = pl.pallas_call(
            _encode_norm_ktiled_kernel,
            out_shape=jax.ShapeDtypeStruct((Rp, Mp), jnp.bfloat16),
            grid=(Rp // tm, Fp // tk),
            in_specs=[
                pl.BlockSpec((tm, tk), lambda i, k: (i, k)),
                pl.BlockSpec((tk, Mp), lambda i, k: (k, 0)),
            ],
            out_specs=pl.BlockSpec((tm, Mp), lambda i, k: (i, 0)),
            scratch_shapes=[pltpu.VMEM((tm, Mp), jnp.float32)],
            compiler_params=pltpu.CompilerParams(
                dimension_semantics=("parallel", "arbitrary"),
                vmem_limit_bytes=_VMEM_LIMIT),
        )(xb, wb)
    return emb, Mp


# ------ fused similarity (q @ k.T / T) + per-row cross-entropy (online) ------

def _socola_loss_kernel(invt_ref, q_ref, k_ref, sims_ref, loss_ref,
                        m_sc, l_sc, tgt_sc):
    # invt_ref: (1,) f32 SMEM scalar (1 / clamped T)
    # q_ref:    (RT, MP) bf16 normalized query rows (resident over key axis)
    # k_ref:    (CT, MP) bf16 normalized UNSHUFFLED key rows (no HBM transpose)
    # sims_ref: (RT, CT) bf16 similarity-logit tile (bf16 writeback)
    # loss_ref: (RT, 1)  f32 per-row cross-entropy (written at last key tile)
    i = pl.program_id(0)
    j = pl.program_id(1)
    rt, ct = sims_ref.shape

    @pl.when(j == 0)
    def _():
        m_sc[...] = jnp.full_like(m_sc, -jnp.inf)
        l_sc[...] = jnp.zeros_like(l_sc)
        tgt_sc[...] = jnp.zeros_like(tgt_sc)

    # sim = (q @ k^T) / T: bf16 operands into the MXU contracting the feature
    # dim of both operands (A . B^T, no operand transpose anywhere); 1/T is
    # applied to the f32 result (one rt x ct mul on MXU slack; avoids the
    # small-T bf16 logit-precision problem of pre-scaling q).
    sim = lax.dot_general(q_ref[...], k_ref[...], (((1,), (1,)), ((), ())),
                          preferred_element_type=jnp.float32)
    sim = sim * invt_ref[0]
    sims_ref[...] = sim.astype(sims_ref.dtype)

    # online log-sum-exp over the tiled key axis (all f32 -- v5e-safe)
    m_new = jnp.maximum(m_sc[...], jnp.max(sim, axis=1, keepdims=True))
    alpha = jnp.exp(m_sc[...] - m_new)
    l_sc[...] = alpha * l_sc[...] + jnp.sum(jnp.exp(sim - m_new), axis=1,
                                            keepdims=True)
    m_sc[...] = m_new

    # Target logit: keys are unshuffled so labels == arange and the target
    # column for global row r is r itself -> only block-diagonal tiles can
    # contribute; off-diagonal tiles skip the iota/compare/select/reduce.
    row0 = i * rt
    col0 = j * ct

    @pl.when(jnp.logical_and(col0 < row0 + rt, row0 < col0 + ct))
    def _():
        rows = row0 + lax.broadcasted_iota(jnp.int32, (rt, ct), 0)
        cols = col0 + lax.broadcasted_iota(jnp.int32, (rt, ct), 1)
        tgt_sc[...] += jnp.sum(jnp.where(rows == cols, sim, 0.0), axis=1,
                               keepdims=True)

    @pl.when(j == pl.num_programs(1) - 1)
    def _():
        loss_ref[...] = m_sc[...] + jnp.log(l_sc[...]) - tgt_sc[...]


def socola_sims_and_losses(inv_t, emb, B, Mp):
    """emb: padded (Rp, Mp) bf16 slab; queries in rows [0,B), keys in [B,2B)."""
    rt = _pick_div_tile(B, (512, 256, 128, 64, 32, 16, 8))   # query-row tile
    # key-row tile: largest lane-friendly divisor of B whose double-buffered
    # tiles fit the VMEM budget; fall back to the full key extent B.
    ct = B
    for c in (4096, 2048, 1024, 512, 256, 128):
        if B % c == 0:
            tile_bytes = (2 * rt * Mp * 2       # q tile
                          + 2 * c * Mp * 2      # key tile
                          + 2 * rt * c * 2      # bf16 sims tile
                          + 4 * rt * 4)         # scratch/loss
            if tile_bytes <= _VMEM_LIMIT // 2:
                ct = c
                break
    assert B % rt == 0 and B % ct == 0 and ct % 8 == 0
    kb0 = B // ct   # first key block index inside the shared embedding slab

    sims, row_losses = pl.pallas_call(
        _socola_loss_kernel,
        out_shape=(
            jax.ShapeDtypeStruct((B, B), jnp.bfloat16),   # bf16 sims writeback
            jax.ShapeDtypeStruct((B, 1), jnp.float32),
        ),
        grid=(B // rt, B // ct),
        in_specs=[
            pl.BlockSpec(memory_space=pltpu.MemorySpace.SMEM),   # 1/T scalar
            pl.BlockSpec((rt, Mp), lambda i, j: (i, 0)),         # query rows
            pl.BlockSpec((ct, Mp), lambda i, j: (kb0 + j, 0)),   # key rows
        ],
        out_specs=(
            pl.BlockSpec((rt, ct), lambda i, j: (i, j)),         # sims
            pl.BlockSpec((rt, 1), lambda i, j: (i, 0)),          # per-row CE
        ),
        scratch_shapes=[pltpu.VMEM((rt, 1), jnp.float32)] * 3,
        compiler_params=pltpu.CompilerParams(
            dimension_semantics=("parallel", "arbitrary"),
            vmem_limit_bytes=_VMEM_LIMIT),
    )(inv_t, emb, emb)
    return sims, row_losses


# ------------------------------- full forward -------------------------------

def socola_forward(all_query_imgs, all_key_imgs, enc_w, T, shuffle_key,
                   sub_batch_size):
    """Returns (avg_loss, all_sims, all_labels) like SOCOLA.forward."""
    B = all_query_imgs.shape[0]
    # sum_sub(mean_sub / n_subs) == global row mean only for full sub-batches.
    assert B % sub_batch_size == 0, "ragged sub-batches are not supported"
    assert B % 8 == 0, "batch must be sublane (8) aligned for the Pallas tiles"

    # self.T.clamp_(0.001, 1); sim / T applied to the f32 logits in-kernel
    T_c = jnp.clip(jnp.asarray(T, jnp.float32), 0.001, 1.0)
    inv_t = (1.0 / T_c).reshape((1,))

    xq = all_query_imgs.reshape(B, -1)
    xk = all_key_imgs.reshape(B, -1)

    # One encoder pass over queries+keys: weight reused over 2B rows, L2
    # normalization fused and applied exactly once per embedding.
    emb, Mp = encode_normalize_pair(xq, xk, enc_w)

    # Similarities + per-row CE on UNSHUFFLED keys (labels == arange).  Cross
    # entropy is invariant under a consistent column permutation, so the key
    # shuffle only affects the *returned* logits and labels.
    sims_unshuf, row_losses = socola_sims_and_losses(inv_t, emb, B, Mp)

    # key shuffle; all_labels.scatter_(0, shuffled_idx, arange) == inverse perm
    shuffled_idx = jax.random.permutation(shuffle_key, B)
    all_labels = jnp.argsort(shuffled_idx).astype(jnp.int32)
    # Column-permute the logits to match PyTorch's q @ k_shuffled^T / T:
    # all_sims[i, j'] = sims_unshuf[i, shuffled_idx[j']].
    all_sims = sims_unshuf[:, shuffled_idx]

    # avg_loss = sum over sub-batches of (mean-per-sub / n_subs) == global mean
    avg_loss = jnp.mean(row_losses)

    # TODO(synk): loss.backward() inside the PyTorch forward is training-loop
    # machinery with no forward-pass Pallas equivalent; omitted.
    return avg_loss, all_sims, all_labels


if __name__ == "__main__":
    # small shapes consistent with the module
    B = 16              # total batch
    SUB_BS = 8          # sub_batch_size
    C, H, W = 3, 8, 8   # NCHW images
    MLP_DIM = 32        # base_encoder(num_classes=mlp_dim)
    T_INIT = 0.07

    key = jax.random.PRNGKey(0)
    k_q, k_k, k_w, k_perm = jax.random.split(key, 4)

    all_query_imgs = jax.random.normal(k_q, (B, C, H, W), jnp.float32)
    all_key_imgs = jax.random.normal(k_k, (B, C, H, W), jnp.float32)

    # deterministic synthetic encoder weight (bias-free linear encoder)
    enc_w = (jax.random.normal(k_w, (C * H * W, MLP_DIM), jnp.float32)
             * (1.0 / jnp.sqrt(C * H * W)))

    avg_loss, all_sims, all_labels = socola_forward(
        all_query_imgs, all_key_imgs, enc_w, T_INIT, k_perm, SUB_BS)

    jax.block_until_ready((avg_loss, all_sims, all_labels))
    assert all_sims.shape == (B, B)
    assert all_labels.shape == (B,)
    assert bool(jnp.isfinite(avg_loss))
    print("KERNEL_OK")
</pallas_src>

<mosaic_0001>
module attributes {stable_mosaic.version = 11 : i64} {
  func.func @_encode_norm_resident_kernel(%arg0: i32, %arg1: memref<16x256xbf16, #tpu.memory_space<vmem>>, %arg2: memref<256x128xbf16, #tpu.memory_space<vmem>>, %arg3: memref<16x128xbf16, #tpu.memory_space<vmem>>) attributes {dimension_semantics = [#tpu.dimension_semantics<parallel>], iteration_bounds = array<i64: 2>, scalar_prefetch = 0 : i64, scratch_operands = 0 : i64, tpu.core_type = #tpu.core_type<tc>, window_params = [{transform_indices = @transform_0, window_bounds = array<i64: 16, 256>}, {pipeline_mode = #tpu.pipeline_mode<synchronous>, transform_indices = @transform_1, window_bounds = array<i64: 256, 128>}, {transform_indices = @transform_2, window_bounds = array<i64: 16, 128>}]} {
    %c0 = arith.constant 0 : index
    %c0_0 = arith.constant 0 : index
    %0 = vector.load %arg1[%c0, %c0_0] : memref<16x256xbf16, #tpu.memory_space<vmem>>, vector<16x256xbf16>
    %c0_1 = arith.constant 0 : index
    %c0_2 = arith.constant 0 : index
    %1 = vector.load %arg2[%c0_1, %c0_2] : memref<256x128xbf16, #tpu.memory_space<vmem>>, vector<256x128xbf16>
    %cst = arith.constant dense<0.000000e+00> : vector<16x128xf32>
    %2 = tpu.matmul %0, %1, %cst {dimension_numbers = #tpu.dot_dimension_numbers<[1], [0], [0], [1], [0, 0, 1, 1], [], []>} : vector<16x256xbf16>, vector<256x128xbf16>, vector<16x128xf32> -> vector<16x128xf32>
    %3 = arith.mulf %2, %2 : vector<16x128xf32>
    %cst_3 = arith.constant dense<0.000000e+00> : vector<16xf32>
    %4 = vector.multi_reduction <add>, %3, %cst_3 [1] : vector<16x128xf32> to vector<16xf32>
    %5 = vector.shape_cast %4 : vector<16xf32> to vector<16x1xf32>
    %cst_4 = arith.constant 1.000000e-24 : f32
    %6 = vector.broadcast %cst_4 : f32 to vector<16x1xf32>
    %7 = arith.maximumf %5, %6 : vector<16x1xf32>
    %8 = math.rsqrt %7 : vector<16x1xf32>
    %9 = vector.broadcast %8 : vector<16x1xf32> to vector<16x128xf32>
    %10 = arith.mulf %2, %9 : vector<16x128xf32>
    %11 = arith.truncf %10 : vector<16x128xf32> to vector<16x128xbf16>
    %c0_5 = arith.constant 0 : index
    %c0_6 = arith.constant 0 : index
    %12 = vector.load %arg3[%c0_5, %c0_6] : memref<16x128xbf16, #tpu.memory_space<vmem>>, vector<16x128xbf16>
    tpu.vector_store %arg3[%c0_5, %c0_6], %11 {strides = array<i32>} : memref<16x128xbf16, #tpu.memory_space<vmem>>, vector<16x128xbf16>,
    return
  }
  func.func @transform_0(%arg0: i32) -> (i32, i32) {
    %c0_i32 = arith.constant 0 : i32
    %c0_i32_0 = arith.constant 0 : i32
    return %arg0, %c0_i32 : i32, i32
  }
  func.func @transform_1(%arg0: i32) -> (i32, i32) {
    %c0_i32 = arith.constant 0 : i32
    %c0_i32_0 = arith.constant 0 : i32
    %c0_i32_1 = arith.constant 0 : i32
    return %c0_i32, %c0_i32_0 : i32, i32
  }
  func.func @transform_2(%arg0: i32) -> (i32, i32) {
    %c0_i32 = arith.constant 0 : i32
    %c0_i32_0 = arith.constant 0 : i32
    return %arg0, %c0_i32 : i32, i32
  }
}

</mosaic_0001>

<llo_original>
// kernel: tpu_custom_call.1
$region0: #{tpu_custom_call.1}
  #allocation0 [shape = 'u32[]', space=smem, size = 0x4, offset = 0x4, fixed_abs, tag = 'smem constant byte address 0x4 - core index']
  #allocation1 [shape = 'u32[144,128]{1,0:T(1,128)}', space=vmem, size = 0x12000, scoped, tag = 'internal scratch']
  %s0 = inlined_call_operand.hbm [shape: bf16[32,256], index: 0, kind: input, shape index: {}]
  %s1 = inlined_call_operand.hbm [shape: bf16[256,128], index: 1, kind: input, shape index: {}]
  %s2 = inlined_call_operand.hbm [shape: bf16[32,128], index: 2, kind: output, shape index: {}]
  %s3 = sld [smem:[#allocation0]]
  $region49: #{tpu_custom_call.1} parent=0
    _
  %s5 = ssub.s32 1, %s3
  %s6 = scalar_select 0, %s5, %s3
  $region1: #{tpu_custom_call.1} parent=0
    #allocation2 [shape = 'u8[16384]{0}', space=vmem, size = 0x4000, scoped, tag = 'input window, operand 0']
    #allocation3 [shape = 's32[2]{0}', space=sflag, size = 0x8, scoped, tag = 'scoped memory for tpu_custom_call.1']
    #allocation4 [shape = 's32[2]{0}', space=sflag, size = 0x8, scoped, tag = 'scoped memory for tpu_custom_call.1']
    #allocation5 [shape = 'u8[65536]{0}', space=vmem, size = 0x10000, scoped, tag = 'input window, operand 1, single buffered']
    #allocation6 [shape = 's32[1]{0}', space=sflag, size = 0x4, scoped, tag = 'scoped memory for tpu_custom_call.1']
    #allocation7 [shape = 'u8[8192]{0}', space=vmem, size = 0x2000, scoped, tag = 'output window, operand 0']
    %7 = vsyncpa [#allocation3], 0
    %s8 = scalar_lea.sflag [#allocation3], 1
    %9 = vsyncpa %s8, 0
    %10 = vsyncpa [#allocation6], 0
    %11 = vsyncpa [#allocation4], 0
    %s12 = scalar_lea.sflag [#allocation4], 1
    %13 = vsyncpa %s12, 0
    loop: start=0, step=1, limit=4
    $region2: #{tpu_custom_call.1} parent=1 // loop_pre_header
      _
    $region3: #{tpu_custom_call.1} parent=1 // loop_header
      %s15 = sphi 0, %s19
      %p16 = scmp.ge.s32.totalorder %s15, 4
      %s25 = sphi 0, %s27
      %s28 = sphi 0, %s25
      %s29 = sphi 0, %s28
      %s45 = sphi 0, %s29
      %s49 = sphi 0, %s49
      %s51 = sphi 0, %s49
      %s52 = sphi 0, %s51
      %s66 = sphi 0, %s52
      %s72 = sphi 0, %s74
      %s75 = sphi 0, %s72
      %s76 = sphi 0, %s75
      %s92 = sphi 0, %s76
    $region4: #{tpu_custom_call.1} parent=1 // loop_header_branch
      %18 = sbr.rel (%p16) target = $region8
    $region5: #{tpu_custom_call.1} parent=1 // loop_body
      %s20 = ssub.s32 %s15, 1
      %s21 = ssub.s32 %s15, 2
      %s22 = sadd.s32 %s15, 1
      %s23 = ssub.s32 %s15, %s22
      %p24 = scmp.eq.s32.totalorder %s23, 0
      %s26 = sadd.s32 %s25, 1
      %s27 = scalar_select %p24, %s25, %s26
      %p30 = pneg %p24
      %p31 = scmp.eq.s32.totalorder %s15, 1
      %p32 = por %p30, %p31
      %p33 = scmp.ne.s32.totalorder %s25, %s28
      %p34 = scmp.eq.s32.totalorder %s15, 0
      %p35 = por %p33, %p34
      %p36 = scmp.ne.s32.totalorder %s25, %s28
      %p37 = scmp.eq.s32.totalorder %s20, 1
      %p38 = por %p36, %p37
      %p39 = scmp.ne.s32.totalorder %s28, %s29
      %p40 = scmp.eq.s32.totalorder %s20, 0
      %p41 = por %p39, %p40
      %p42 = scmp.ne.s32.totalorder %s28, %s29
      %p43 = scmp.eq.s32.totalorder %s21, 1
      %p44 = por %p42, %p43
      %p46 = scmp.ne.s32.totalorder %s29, %s45
      %p47 = scmp.eq.s32.totalorder %s21, 0
      %p48 = por %p46, %p47
      %s50 = sadd.s32 %s49, 1
      %p53 = scmp.eq.s32.totalorder %s15, 1
      %p54 = scmp.ne.s32.totalorder %s49, %s51
      %p55 = scmp.eq.s32.totalorder %s15, 0
      %p56 = por %p54, %p55
      %p57 = scmp.ne.s32.totalorder %s49, %s51
      %p58 = scmp.eq.s32.totalorder %s20, 1
      %p59 = por %p57, %p58
      %p60 = scmp.ne.s32.totalorder %s51, %s52
      %p61 = scmp.eq.s32.totalorder %s20, 0
      %p62 = por %p60, %p61
      %p63 = scmp.ne.s32.totalorder %s51, %s52
      %p64 = scmp.eq.s32.totalorder %s21, 1
      %p65 = por %p63, %p64
      %p67 = scmp.ne.s32.totalorder %s52, %s66
      %p68 = scmp.eq.s32.totalorder %s21, 0
      %p69 = por %p67, %p68
      %s70 = ssub.s32 %s15, %s22
      %p71 = scmp.eq.s32.totalorder %s70, 0
      %s73 = sadd.s32 %s72, 1
      %s74 = scalar_select %p71, %s72, %s73
      %p77 = pneg %p71
      %p78 = scmp.eq.s32.totalorder %s15, 1
      %p79 = por %p77, %p78
      %p80 = scmp.ne.s32.totalorder %s72, %s75
      %p81 = scmp.eq.s32.totalorder %s15, 0
      %p82 = por %p80, %p81
      %p83 = scmp.ne.s32.totalorder %s72, %s75
      %p84 = scmp.eq.s32.totalorder %s20, 1
      %p85 = por %p83, %p84
      %p86 = scmp.ne.s32.totalorder %s75, %s76
      %p87 = scmp.eq.s32.totalorder %s20, 0
      %p88 = por %p86, %p87
      %p89 = scmp.ne.s32.totalorder %s75, %s76
      %p90 = scmp.eq.s32.totalorder %s21, 1
      %p91 = por %p89, %p90
      %p93 = scmp.ne.s32.totalorder %s76, %s92
      %p94 = scmp.eq.s32.totalorder %s21, 0
      %p95 = por %p93, %p94
      %p96 = scmp.le.s32.totalorder 1, %s15
      %p97 = scmp.lt.s32.totalorder %s15, 3
      %p98 = pnand %p96, %p97
      %p99 = pneg %p98
      // Predicated region
      $region9: #{tpu_custom_call.1} parent=5 // pred_check
        _
      $region10: #{tpu_custom_call.1} parent=5 // pred_check_branch
        %101 = sbr.rel (%p98) target = $region12
      $region11: #{tpu_custom_call.1} parent=5 // pred_region
        %s102 = ssub.s32 %s15, 1
        // Predicated region
        $region13: #{tpu_custom_call.1} parent=11 // pred_check
          %p103 = pneg %p62
        $region14: #{tpu_custom_call.1} parent=11 // pred_check_branch
          %105 = sbr.rel (%p103) target = $region16
        $region15: #{tpu_custom_call.1} parent=11 // pred_region
          %s107 = ssub.s32 2048, 2048
          %108 = vsyncadd [#allocation6], %s107
          %s109 = sshll.u32 [#allocation5], 4
          %s110 = int_to_ptr.vmem [resolvable:$true] %s109
          %115 = dma.hbm_to_vmem [thread:$0]  %s1, 2048, %s110, [#allocation6], 64, 64, 4
        $region16: #{tpu_custom_call.1} parent=11 // pred_fallthru
          _
      $region12: #{tpu_custom_call.1} parent=5 // pred_fallthru
        _
      %p116 = scmp.lt.s32.totalorder %s15, 2
      // Predicated region
      $region17: #{tpu_custom_call.1} parent=5 // pred_check
        %p117 = pneg %p116
      $region18: #{tpu_custom_call.1} parent=5 // pred_check_branch
        %119 = sbr.rel (%p117) target = $region20
      $region19: #{tpu_custom_call.1} parent=5 // pred_region
        // Predicated region
        $region21: #{tpu_custom_call.1} parent=19 // pred_check
          %p120 = pneg %p35
        $region22: #{tpu_custom_call.1} parent=19 // pred_check_branch
          %122 = sbr.rel (%p120) target = $region24
        $region23: #{tpu_custom_call.1} parent=19 // pred_region
          %s123 = sand.u32 %s25, 1
          %s124 = scalar_lea.sflag [#allocation3], %s123
          %s125 = sand.u32 %s25, 1
          %s126 = smul.addr %s125, 16
          %s127 = scalar_lea.vmem [#allocation2], %s126
          %s128 = smul.u32 2, %s15
          %s130 = ssub.s32 256, 256
          %131 = vsyncadd %s124, %s130
          %s132 = smul.addr %s128, 2
          %s133 = smul.addr %s132, 64
          %s134 = scalar_lea.hbm %s0, %s133
          %s135 = sshll.u32 %s127, 4
          %s136 = int_to_ptr.vmem [resolvable:$true] %s135
          %141 = dma.hbm_to_vmem [thread:$0]  %s134, 256, %s136, %s124, 128, 128, 8
        $region24: #{tpu_custom_call.1} parent=19 // pred_fallthru
          _
      $region20: #{tpu_custom_call.1} parent=5 // pred_fallthru
        _
      %p142 = scmp.le.s32.totalorder 1, %s15
      %p143 = scmp.lt.s32.totalorder %s15, 3
      %p144 = pnand %p142, %p143
      %p145 = pneg %p144
      // Predicated region
      $region25: #{tpu_custom_call.1} parent=5 // pred_check
        _
      $region26: #{tpu_custom_call.1} parent=5 // pred_check_branch
        %147 = sbr.rel (%p144) target = $region28
      $region27: #{tpu_custom_call.1} parent=5 // pred_region
        %s148 = ssub.s32 %s15, 1
        %s149 = sand.u32 %s28, 1
        %s150 = scalar_lea.sflag [#allocation3], %s149
        %s151 = sand.u32 %s28, 1
        %s152 = smul.addr %s151, 16
        %s153 = scalar_lea.vmem [#allocation2], %s152
        // Predicated region
        $region29: #{tpu_custom_call.1} parent=27 // pred_check
          %p154 = pneg %p41
        $region30: #{tpu_custom_call.1} parent=27 // pred_check_branch
          %156 = sbr.rel (%p154) target = $region32
        $region31: #{tpu_custom_call.1} parent=27 // pred_region
          %157 = dma.done %s150, 256
        $region32: #{tpu_custom_call.1} parent=27 // pred_fallthru
          _
        // Predicated region
        $region33: #{tpu_custom_call.1} parent=27 // pred_check
          %p158 = pneg %p62
        $region34: #{tpu_custom_call.1} parent=27 // pred_check_branch
          %160 = sbr.rel (%p158) target = $region36
        $region35: #{tpu_custom_call.1} parent=27 // pred_region
          %161 = dma.done [#allocation6], 2048
        $region36: #{tpu_custom_call.1} parent=27 // pred_fallthru
          _
        %s162 = sand.u32 %s28, 1
        %s163 = scalar_lea.sflag [#allocation3], %s162
        %s164 = sand.u32 %s28, 1
        %s165 = smul.addr %s164, 16
        %s166 = scalar_lea.vmem [#allocation2], %s165
        %p167 = pneg %p41
        %p168 = pneg %p38
        %p169 = pneg %p62
        %p170 = pneg %p59
        %p171 = pneg %p88
        %p172 = pneg %p85
        %s173 = sand.u32 %s75, 1
        %s174 = scalar_lea.sflag [#allocation4], %s173
        %s175 = sand.u32 %s75, 1
        %s176 = smul.addr %s175, 8
        %s177 = scalar_lea.vmem [#allocation7], %s176
        %s178 = smul.u32 2, %s20
        %s179 = smul.u32 2, %s20
        %v181 = vld [vmem:[%s153] sm:$0xff]
        %v182 = vld [vmem:[%s153 + $0x8] sm:$0xff]
        %v183 = vld [vmem:[#allocation5] sm:$0xf]
        %v184 = vld [vmem:[#allocation5 + $0x4] sm:$0xf]
        %v185 = vld [vmem:[#allocation5 + $0x8] sm:$0xf]
        %v186 = vld [vmem:[#allocation5 + $0xc] sm:$0xf]
        %v187 = vld [vmem:[#allocation5 + $0x10] sm:$0xf]
        %v188 = vld [vmem:[#allocation5 + $0x14] sm:$0xf]
        %v189 = vld [vmem:[#allocation5 + $0x18] sm:$0xf]
        %v190 = vld [vmem:[#allocation5 + $0x1c] sm:$0xf]
        %v191 = vld [vmem:[#allocation5 + $0x20] sm:$0xf]
        %v192 = vld [vmem:[#allocation5 + $0x24] sm:$0xf]
        %v193 = vld [vmem:[#allocation5 + $0x28] sm:$0xf]
        %v194 = vld [vmem:[#allocation5 + $0x2c] sm:$0xf]
        %v195 = vld [vmem:[#allocation5 + $0x30] sm:$0xf]
        %v196 = vld [vmem:[#allocation5 + $0x34] sm:$0xf]
        %v197 = vld [vmem:[#allocation5 + $0x38] sm:$0xf]
        %v198 = vld [vmem:[#allocation5 + $0x3c] sm:$0xf]
        %v199 = vld [vmem:[#allocation5 + $0x40] sm:$0xf]
        %v200 = vld [vmem:[#allocation5 + $0x44] sm:$0xf]
        %v201 = vld [vmem:[#allocation5 + $0x48] sm:$0xf]
        %v202 = vld [vmem:[#allocation5 + $0x4c] sm:$0xf]
        %v203 = vld [vmem:[#allocation5 + $0x50] sm:$0xf]
        %v204 = vld [vmem:[#allocation5 + $0x54] sm:$0xf]
        %v205 = vld [vmem:[#allocation5 + $0x58] sm:$0xf]
        %v206 = vld [vmem:[#allocation5 + $0x5c] sm:$0xf]
        %v207 = vld [vmem:[#allocation5 + $0x60] sm:$0xf]
        %v208 = vld [vmem:[#allocation5 + $0x64] sm:$0xf]
        %v209 = vld [vmem:[#allocation5 + $0x68] sm:$0xf]
        %v210 = vld [vmem:[#allocation5 + $0x6c] sm:$0xf]
        %v211 = vld [vmem:[#allocation5 + $0x70] sm:$0xf]
        %v212 = vld [vmem:[#allocation5 + $0x74] sm:$0xf]
        %v213 = vld [vmem:[#allocation5 + $0x78] sm:$0xf]
        %v214 = vld [vmem:[#allocation5 + $0x7c] sm:$0xf]
        %v217 = vunpack.c.l.b16 %v181
        %v218 = vunpack.c.h.b16 %v181
        %v219 = vunpack.c.l.b16 %v182
        %v220 = vunpack.c.h.b16 %v182
        %v221 = vpack.c.b16 %v219, %v217
        %v222 = vpack.c.b16 %v220, %v218
        %v257 = vunpack.c.l.b16 %v183
        %v258 = vunpack.c.l.b16 %v184
        %v259 = vunpack.c.l.b16 %v185
        %v260 = vunpack.c.l.b16 %v186
        %v261 = vunpack.c.l.b16 %v187
        %v262 = vunpack.c.l.b16 %v188
        %v263 = vunpack.c.l.b16 %v189
        %v264 = vunpack.c.l.b16 %v190
        %v265 = vunpack.c.l.b16 %v191
        %v266 = vunpack.c.l.b16 %v192
        %v267 = vunpack.c.l.b16 %v193
        %v268 = vunpack.c.l.b16 %v194
        %v269 = vunpack.c.l.b16 %v195
        %v270 = vunpack.c.l.b16 %v196
        %v271 = vunpack.c.l.b16 %v197
        %v272 = vunpack.c.l.b16 %v198
        %v273 = vunpack.c.l.b16 %v199
        %v274 = vunpack.c.l.b16 %v200
        %v275 = vunpack.c.l.b16 %v201
        %v276 = vunpack.c.l.b16 %v202
        %v277 = vunpack.c.l.b16 %v203
        %v278 = vunpack.c.l.b16 %v204
        %v279 = vunpack.c.l.b16 %v205
        %v280 = vunpack.c.l.b16 %v206
        %v281 = vunpack.c.l.b16 %v207
        %v282 = vunpack.c.l.b16 %v208
        %v283 = vunpack.c.l.b16 %v209
        %v284 = vunpack.c.l.b16 %v210
        %v285 = vunpack.c.l.b16 %v211
        %v286 = vunpack.c.l.b16 %v212
        %v287 = vunpack.c.l.b16 %v213
        %v288 = vunpack.c.l.b16 %v214
        %v289 = vpack.c.b16 %v258, %v257
        %v290 = vpack.c.b16 %v260, %v259
        %v291 = vpack.c.b16 %v262, %v261
        %v292 = vpack.c.b16 %v264, %v263
        %v293 = vpack.c.b16 %v266, %v265
        %v294 = vpack.c.b16 %v268, %v267
        %v295 = vpack.c.b16 %v270, %v269
        %v296 = vpack.c.b16 %v272, %v271
        %v297 = vpack.c.b16 %v274, %v273
        %v298 = vpack.c.b16 %v276, %v275
        %v299 = vpack.c.b16 %v278, %v277
        %v300 = vpack.c.b16 %v280, %v279
        %v301 = vpack.c.b16 %v282, %v281
        %v302 = vpack.c.b16 %v284, %v283
        %v303 = vpack.c.b16 %v286, %v285
        %v304 = vpack.c.b16 %v288, %v287
        %321 = vmatprep.subr.bf16.mxu0 0
        %322 = vmatpush1.bf16.msra.mxu0 %v296
        %323 = vmatprep.subr.bf16.mxu0 0
        %324 = vmatpush1.bf16.msra.mxu0 %v295
        %325 = vmatprep.subr.bf16.mxu0 0
        %326 = vmatpush1.bf16.msra.mxu0 %v294
        %327 = vmatprep.subr.bf16.mxu0 0
        %328 = vmatpush1.bf16.msra.mxu0 %v293
        %329 = vmatprep.subr.bf16.mxu0 0
        %330 = vmatpush1.bf16.msra.mxu0 %v292
        %331 = vmatprep.subr.bf16.mxu0 0
        %332 = vmatpush1.bf16.msra.mxu0 %v291
        %333 = vmatprep.subr.bf16.mxu0 0
        %334 = vmatpush1.bf16.msra.mxu0 %v290
        %335 = vmatprep.subr.bf16.mxu0 0
        %336 = vmatpush1.bf16.msra.mxu0 %v289
        %337 = vmatprep.subr.bf16.mxu0 0
        %338 = vmatpush2.bf16.msra.mxu0 %v304
        %339 = vmatprep.subr.bf16.mxu0 0
        %340 = vmatpush2.bf16.msra.mxu0 %v303
        %341 = vmatprep.subr.bf16.mxu0 0
        %342 = vmatpush2.bf16.msra.mxu0 %v302
        %343 = vmatprep.subr.bf16.mxu0 0
        %344 = vmatpush2.bf16.msra.mxu0 %v301
        %345 = vmatprep.subr.bf16.mxu0 0
        %346 = vmatpush2.bf16.msra.mxu0 %v300
        %347 = vmatprep.subr.bf16.mxu0 0
        %348 = vmatpush2.bf16.msra.mxu0 %v299
        %349 = vmatprep.subr.bf16.mxu0 0
        %350 = vmatpush2.bf16.msra.mxu0 %v298
        %351 = vmatprep.subr.bf16.mxu0 0
        %352 = vmatpush2.bf16.msra.mxu0 %v297
        %353 = vmatprep.mubr.bf16.mxu0 %v222
        %354 = vmatmul.mubr.bf16.gmra.mxu0 %v221
        %v355 = vpop.f32.mrf.mxu0
        %v356 = vadd.f32 0.0, %v355
        %v357 = vpop.f32.mrf.mxu0
        %v358 = vpop.f32.mrf.mxu0
        %v359 = vadd.f32 0.0, %v358
        %v360 = vpop.f32.mrf.mxu0
        %361 = vdwg.mxu0
        %v362 = vmul.f32 %v356, %v356
        %v363 = vmul.f32 %v359, %v359
        %364 = vadd.xlane.f32.xlu0 %v362
        %v365 = vpop.xlane.xlu0 %364
        %366 = vadd.xlane.f32.xlu0 %v363
        %v367 = vpop.xlane.xlu0 %366
        %v368 = vmax.f32 %v365, 1e-24
        %v369 = vmax.f32 %v367, 1e-24
        %v370 = vrsqrt.pop %v368
        %v371 = vrsqrt.pop %v369
        %v372 = vmul.f32 %v356, %v370
        %v373 = vmul.f32 %v359, %v371
        %v374 = vpack.c.bf16 %v373, %v372
        %v376 = vunpack.c.l.b16 %v374
        %v377 = vunpack.c.h.b16 %v374
        %v378 = vpack.c.b16 %v376, %v376
        %v379 = vpack.c.b16 %v377, %v377
        %382 = vst [vmem:[%s177] sm:$0xf] %v378
        %383 = vst [vmem:[%s177 + $0x4] sm:$0xf] %v379
        %s384 = sand.u32 %s75, 1
        %s385 = scalar_lea.sflag [#allocation4], %s384
        %s386 = sand.u32 %s75, 1
        %s387 = smul.addr %s386, 8
        %s388 = scalar_lea.vmem [#allocation7], %s387
        // Predicated region
        $region37: #{tpu_custom_call.1} parent=27 // pred_check
          %p389 = pneg %p85
        $region38: #{tpu_custom_call.1} parent=27 // pred_check_branch
          %391 = sbr.rel (%p389) target = $region40
        $region39: #{tpu_custom_call.1} parent=27 // pred_region
          %s392 = smul.u32 2, %s20
          %s394 = ssub.s32 128, 128
          %395 = vsyncadd %s385, %s394
          %s396 = smul.addr %s392, 64
          %s397 = scalar_lea.hbm %s2, %s396
          %s398 = sshll.u32 %s388, 4
          %s399 = int_to_ptr.vmem [resolvable:$true] %s398
          %404 = dma.vmem_to_hbm [thread:$0]  %s399, 128, %s397, %s385, 64, 64, 4
        $region40: #{tpu_custom_call.1} parent=27 // pred_fallthru
          _
      $region28: #{tpu_custom_call.1} parent=5 // pred_fallthru
        _
      %p405 = scmp.le.s32.totalorder 2, %s15
      // Predicated region
      $region41: #{tpu_custom_call.1} parent=5 // pred_check
        %p406 = pneg %p405
      $region42: #{tpu_custom_call.1} parent=5 // pred_check_branch
        %408 = sbr.rel (%p406) target = $region44
      $region43: #{tpu_custom_call.1} parent=5 // pred_region
        %s409 = ssub.s32 %s15, 2
        // Predicated region
        $region45: #{tpu_custom_call.1} parent=43 // pred_check
          %p410 = pneg %p91
        $region46: #{tpu_custom_call.1} parent=43 // pred_check_branch
          %412 = sbr.rel (%p410) target = $region48
        $region47: #{tpu_custom_call.1} parent=43 // pred_region
          %s413 = sand.u32 %s76, 1
          %s414 = scalar_lea.sflag [#allocation4], %s413
          %s415 = sand.u32 %s76, 1
          %s416 = smul.addr %s415, 8
          %s417 = scalar_lea.vmem [#allocation7], %s416
          %418 = dma.done %s414, 128
        $region48: #{tpu_custom_call.1} parent=43 // pred_fallthru
          _
      $region44: #{tpu_custom_call.1} parent=5 // pred_fallthru
        _
    $region6: #{tpu_custom_call.1} parent=1 // loop_footer
      %s19 = sadd.s32 1, %s15
    $region7: #{tpu_custom_call.1} parent=1 // loop_footer_branch
      %14 = sbr.rel target = $region3
    $region8: #{tpu_custom_call.1} parent=1 // loop_exit
      _
    %419 = vsyncpa [#allocation3], 1
    %s420 = scalar_lea.sflag [#allocation3], 1
    %421 = vsyncpa %s420, 1
    %422 = vsyncpa [#allocation6], 1
    %423 = vsyncpa [#allocation4], 1
    %s424 = scalar_lea.sflag [#allocation4], 1
    %425 = vsyncpa %s424, 1

</llo_original>
